<compile_context>
chip_gen: v5e
topology: v5e:2x2
jax: 0.10.0
libtpu: 0.0.40
codegen_flags: <defaults>
</compile_context>

<pallas_src>
import jax
import jax.numpy as jnp
from jax.experimental import pallas as pl
from jax.experimental.pallas import tpu as pltpu


N_LAYER = 30   # hidden width of the PyTorch module
H_PAD = 32     # hidden width padded to a sublane multiple (30 -> 32)


def _round_up(x, m):
    return ((x + m - 1) // m) * m


def critic_kernel(s_ref, a_ref, w1_ref, w2_ref, bh_ref, wo_ref, bo_ref, q_ref):
    # s_ref : [state_dim,  TILE_B]  states,  batch on the 128-lane axis
    # a_ref : [action_dim, TILE_B]  actions, batch on the 128-lane axis
    # w1_ref: [H_PAD, state_dim]    layer_1 weight   (rows 30..31 zero)
    # w2_ref: [H_PAD, action_dim]   layer_2 weight   (rows 30..31 zero)
    # bh_ref: [H_PAD, 1]            b1 + b2 column   (rows 30..31 zero)
    # wo_ref: [1, H_PAD]            output weight row (cols 30..31 zero)
    # bo_ref: [1, 1] (SMEM)         output bias scalar
    # q_ref : [1, TILE_B]           lane-dense q values for this batch tile
    h = jnp.dot(w1_ref[...], s_ref[...], preferred_element_type=jnp.float32)
    h = h + jnp.dot(w2_ref[...], a_ref[...], preferred_element_type=jnp.float32)
    h = jnp.maximum(h + bh_ref[...], 0.0)                       # [H_PAD, TILE_B]
    q_ref[...] = (jnp.dot(wo_ref[...], h, preferred_element_type=jnp.float32)
                  + bo_ref[0, 0])                               # [1, TILE_B]


def critic_forward(s, a, prepared, *, tile_cap=32768, min_grid_steps=2):
    """s: [B, state_dim], a: [B, action_dim] -> q: [B, 1] float32."""
    w1p, w2p, bhp, wop, bo = prepared
    B, state_dim = s.shape
    action_dim = a.shape[1]
    h_pad = w1p.shape[0]

    # Batch onto the lane axis (no K-padded concat / ones-row materialized).
    s_t = s.astype(jnp.float32).T            # [state_dim, B]
    a_t = a.astype(jnp.float32).T            # [action_dim, B]

    # Batch tile: as large as possible (amortize the ~0.35 us/step pipeline
    # overhead), multiple of 128, never larger than the lane extent, and with
    # >= min_grid_steps steps so both v7x TensorCores get work.
    if B < 128:
        tb = B                                # full-extent block, single step
    else:
        tb = _round_up(pl.cdiv(B, min_grid_steps), 128)
        tb = min(max(tb, 128), tile_cap, (B // 128) * 128)
    grid = (pl.cdiv(B, tb),)

    q_row = pl.pallas_call(
        critic_kernel,
        out_shape=jax.ShapeDtypeStruct((1, B), jnp.float32),
        grid=grid,
        in_specs=[
            pl.BlockSpec((state_dim, tb), lambda i: (0, i)),      # s^T tile
            pl.BlockSpec((action_dim, tb), lambda i: (0, i)),     # a^T tile
            pl.BlockSpec((h_pad, state_dim), lambda i: (0, 0)),   # W1 (resident)
            pl.BlockSpec((h_pad, action_dim), lambda i: (0, 0)),  # W2 (resident)
            pl.BlockSpec((h_pad, 1), lambda i: (0, 0)),           # b1 + b2
            pl.BlockSpec((1, h_pad), lambda i: (0, 0)),           # Wo row
            pl.BlockSpec(memory_space=pltpu.MemorySpace.SMEM),    # bo scalar
        ],
        out_specs=pl.BlockSpec((1, tb), lambda i: (0, i)),
        compiler_params=pltpu.CompilerParams(
            dimension_semantics=("parallel",),
            # ~20 MB suffices at the default 32k tile (double-buffered inputs/
            # output + the [32, tb] f32 intermediates); 48 MB gives headroom
            # above v5e's 16 MiB default and stays under v7x's 64 MiB physical.
            vmem_limit_bytes=48 * 1024 * 1024,
        ),
    )(s_t, a_t, w1p, w2p, bhp, wop, bo)

    return q_row.reshape(B, 1)


def init_params(key, state_dim, action_dim, n_layer=N_LAYER):
    """PyTorch-style parameters, weights stored [out_features, in_features]."""
    k1, k2, k3, k4 = jax.random.split(key, 4)
    w1 = 0.1 * jax.random.normal(k1, (n_layer, state_dim), jnp.float32)
    b1 = jnp.full((n_layer,), 0.1, jnp.float32)
    w2 = 0.1 * jax.random.normal(k2, (n_layer, action_dim), jnp.float32)
    b2 = jnp.full((n_layer,), 0.1, jnp.float32)
    bound = 1.0 / (n_layer ** 0.5)           # PyTorch default Linear init
    wo = jax.random.uniform(k3, (1, n_layer), jnp.float32, -bound, bound)
    bo = jax.random.uniform(k4, (1, 1), jnp.float32, -bound, bound)
    return (w1, b1, w2, b2, wo, bo)


def prepare_params(params, h_pad=H_PAD):
    """One-time packing: pad hidden width 30 -> 32, pre-sum the hidden biases."""
    w1, b1, w2, b2, wo, bo = params
    n_layer = w1.shape[0]
    pad = h_pad - n_layer
    w1p = jnp.pad(w1, ((0, pad), (0, 0)))                 # [H_PAD, state_dim]
    w2p = jnp.pad(w2, ((0, pad), (0, 0)))                 # [H_PAD, action_dim]
    bhp = jnp.pad(b1 + b2, (0, pad)).reshape(h_pad, 1)    # [H_PAD, 1]
    wop = jnp.pad(wo, ((0, 0), (0, pad)))                 # [1, H_PAD]
    return (w1p, w2p, bhp, wop, bo)


if __name__ == "__main__":
    key = jax.random.PRNGKey(0)
    k_s, k_a, k_p, k_s2, k_a2 = jax.random.split(key, 5)

    state_dim, action_dim = 4, 2
    params = init_params(k_p, state_dim, action_dim)
    prepared = prepare_params(params)
    w1, b1, w2, b2, wo, bo = params

    def reference(s, a):
        h = jnp.maximum(s @ w1.T + b1 + a @ w2.T + b2, 0.0)
        return h @ wo.T + bo

    fwd = jax.jit(critic_forward)

    # Small demo shape (single grid step, masked partial output store).
    batch = 8
    s = jax.random.normal(k_s, (batch, state_dim), jnp.float32)
    a = jax.random.normal(k_a, (batch, action_dim), jnp.float32)
    q = fwd(s, a, prepared)
    jax.block_until_ready(q)
    assert q.shape == (batch, 1)
    assert jnp.allclose(q, reference(s, a), atol=1e-4), "mismatch vs reference (B=8)"

    # Multi-step grid with a ragged final tile (exercises the pipelined path
    # and the out-of-bounds-lane drop).
    batch2 = 300
    s2 = jax.random.normal(k_s2, (batch2, state_dim), jnp.float32)
    a2 = jax.random.normal(k_a2, (batch2, action_dim), jnp.float32)
    q2 = jax.block_until_ready(fwd(s2, a2, prepared))
    assert q2.shape == (batch2, 1)
    assert jnp.allclose(q2, reference(s2, a2), atol=1e-4), "mismatch vs reference (B=300)"

    print("KERNEL_OK")
</pallas_src>

<mosaic_0001>
module attributes {stable_mosaic.version = 11 : i64} {
  func.func @critic_kernel(%arg0: i32, %arg1: memref<4x8xf32, #tpu.memory_space<vmem>>, %arg2: memref<2x8xf32, #tpu.memory_space<vmem>>, %arg3: memref<32x4xf32, #tpu.memory_space<vmem>>, %arg4: memref<32x2xf32, #tpu.memory_space<vmem>>, %arg5: memref<32x1xf32, #tpu.memory_space<vmem>>, %arg6: memref<1x32xf32, #tpu.memory_space<vmem>>, %arg7: memref<1x1xf32, #tpu.memory_space<smem>>, %arg8: memref<1x8xf32, #tpu.memory_space<vmem>>) attributes {dimension_semantics = [#tpu.dimension_semantics<parallel>], iteration_bounds = array<i64: 1>, scalar_prefetch = 0 : i64, scratch_operands = 0 : i64, tpu.core_type = #tpu.core_type<tc>, window_params = [{transform_indices = @transform_0, window_bounds = array<i64: 4, 8>}, {transform_indices = @transform_1, window_bounds = array<i64: 2, 8>}, {pipeline_mode = #tpu.pipeline_mode<synchronous>, transform_indices = @transform_2, window_bounds = array<i64: 32, 4>}, {pipeline_mode = #tpu.pipeline_mode<synchronous>, transform_indices = @transform_3, window_bounds = array<i64: 32, 2>}, {pipeline_mode = #tpu.pipeline_mode<synchronous>, transform_indices = @transform_4, window_bounds = array<i64: 32, 1>}, {pipeline_mode = #tpu.pipeline_mode<synchronous>, transform_indices = @transform_5, window_bounds = array<i64: 1, 32>}, {transform_indices = @transform_6, window_bounds = array<i64: 1, 1>}, {transform_indices = @transform_7, window_bounds = array<i64: 1, 8>}]} {
    %c0 = arith.constant 0 : index
    %c0_0 = arith.constant 0 : index
    %0 = vector.load %arg3[%c0, %c0_0] : memref<32x4xf32, #tpu.memory_space<vmem>>, vector<32x4xf32>
    %c0_1 = arith.constant 0 : index
    %c0_2 = arith.constant 0 : index
    %1 = vector.load %arg1[%c0_1, %c0_2] : memref<4x8xf32, #tpu.memory_space<vmem>>, vector<4x8xf32>
    %cst = arith.constant dense<0.000000e+00> : vector<32x8xf32>
    %2 = tpu.matmul %0, %1, %cst {dimension_numbers = #tpu.dot_dimension_numbers<[1], [0], [0], [1], [0, 0, 1, 1], [], []>} : vector<32x4xf32>, vector<4x8xf32>, vector<32x8xf32> -> vector<32x8xf32>
    %c0_3 = arith.constant 0 : index
    %c0_4 = arith.constant 0 : index
    %3 = vector.load %arg4[%c0_3, %c0_4] : memref<32x2xf32, #tpu.memory_space<vmem>>, vector<32x2xf32>
    %c0_5 = arith.constant 0 : index
    %c0_6 = arith.constant 0 : index
    %4 = vector.load %arg2[%c0_5, %c0_6] : memref<2x8xf32, #tpu.memory_space<vmem>>, vector<2x8xf32>
    %cst_7 = arith.constant dense<0.000000e+00> : vector<32x8xf32>
    %5 = tpu.matmul %3, %4, %cst_7 {dimension_numbers = #tpu.dot_dimension_numbers<[1], [0], [0], [1], [0, 0, 1, 1], [], []>} : vector<32x2xf32>, vector<2x8xf32>, vector<32x8xf32> -> vector<32x8xf32>
    %6 = arith.addf %2, %5 : vector<32x8xf32>
    %c0_8 = arith.constant 0 : index
    %c0_9 = arith.constant 0 : index
    %7 = vector.load %arg5[%c0_8, %c0_9] : memref<32x1xf32, #tpu.memory_space<vmem>>, vector<32x1xf32>
    %8 = vector.broadcast %7 : vector<32x1xf32> to vector<32x8xf32>
    %9 = arith.addf %6, %8 : vector<32x8xf32>
    %cst_10 = arith.constant 0.000000e+00 : f32
    %10 = vector.broadcast %cst_10 : f32 to vector<32x8xf32>
    %11 = arith.maximumf %9, %10 : vector<32x8xf32>
    %c0_11 = arith.constant 0 : index
    %c0_12 = arith.constant 0 : index
    %12 = vector.load %arg6[%c0_11, %c0_12] : memref<1x32xf32, #tpu.memory_space<vmem>>, vector<1x32xf32>
    %cst_13 = arith.constant dense<0.000000e+00> : vector<1x8xf32>
    %13 = tpu.matmul %12, %11, %cst_13 {dimension_numbers = #tpu.dot_dimension_numbers<[1], [0], [0], [1], [0, 0, 1, 1], [], []>} : vector<1x32xf32>, vector<32x8xf32>, vector<1x8xf32> -> vector<1x8xf32>
    %c0_14 = arith.constant 0 : index
    %c0_15 = arith.constant 0 : index
    %14 = memref.load %arg7[%c0_14, %c0_15] : memref<1x1xf32, #tpu.memory_space<smem>>
    %15 = vector.broadcast %14 : f32 to vector<1x8xf32>
    %16 = arith.addf %13, %15 : vector<1x8xf32>
    %c0_16 = arith.constant 0 : index
    %c0_17 = arith.constant 0 : index
    %17 = vector.load %arg8[%c0_16, %c0_17] : memref<1x8xf32, #tpu.memory_space<vmem>>, vector<1x8xf32>
    tpu.vector_store %arg8[%c0_16, %c0_17], %16 {strides = array<i32>} : memref<1x8xf32, #tpu.memory_space<vmem>>, vector<1x8xf32>,
    return
  }
  func.func @transform_0(%arg0: i32) -> (i32, i32) {
    %c0_i32 = arith.constant 0 : i32
    %c0_i32_0 = arith.constant 0 : i32
    return %c0_i32, %arg0 : i32, i32
  }
  func.func @transform_1(%arg0: i32) -> (i32, i32) {
    %c0_i32 = arith.constant 0 : i32
    %c0_i32_0 = arith.constant 0 : i32
    return %c0_i32, %arg0 : i32, i32
  }
  func.func @transform_2(%arg0: i32) -> (i32, i32) {
    %c0_i32 = arith.constant 0 : i32
    %c0_i32_0 = arith.constant 0 : i32
    %c0_i32_1 = arith.constant 0 : i32
    return %c0_i32, %c0_i32_0 : i32, i32
  }
  func.func @transform_3(%arg0: i32) -> (i32, i32) {
    %c0_i32 = arith.constant 0 : i32
    %c0_i32_0 = arith.constant 0 : i32
    %c0_i32_1 = arith.constant 0 : i32
    return %c0_i32, %c0_i32_0 : i32, i32
  }
  func.func @transform_4(%arg0: i32) -> (i32, i32) {
    %c0_i32 = arith.constant 0 : i32
    %c0_i32_0 = arith.constant 0 : i32
    %c0_i32_1 = arith.constant 0 : i32
    return %c0_i32, %c0_i32_0 : i32, i32
  }
  func.func @transform_5(%arg0: i32) -> (i32, i32) {
    %c0_i32 = arith.constant 0 : i32
    %c0_i32_0 = arith.constant 0 : i32
    %c0_i32_1 = arith.constant 0 : i32
    return %c0_i32, %c0_i32_0 : i32, i32
  }
  func.func @transform_6(%arg0: i32) -> (i32, i32) {
    %c0_i32 = arith.constant 0 : i32
    %c0_i32_0 = arith.constant 0 : i32
    %c0_i32_1 = arith.constant 0 : i32
    return %c0_i32, %c0_i32_0 : i32, i32
  }
  func.func @transform_7(%arg0: i32) -> (i32, i32) {
    %c0_i32 = arith.constant 0 : i32
    %c0_i32_0 = arith.constant 0 : i32
    return %c0_i32, %arg0 : i32, i32
  }
}

</mosaic_0001>

<llo_original>
// kernel: critic_forward.1
$region0: #{critic_forward.1}
  #allocation0 [shape = 'u32[]', space=smem, size = 0x4, offset = 0x4, fixed_abs, tag = 'smem constant byte address 0x4 - core index']
  #allocation1 [shape = 'u32[72,128]{1,0:T(1,128)}', space=vmem, size = 0x9000, scoped, tag = 'internal scratch']
  #allocation2 [shape = 'f32[1,1]{1,0:T(1,128)S(6)}', space=smem, size = 0x200, scoped, tag = 'scoped memory for critic_forward.1']
  %s0 = inlined_call_operand.vmem [shape: f32[4,8], index: 0, kind: input, shape index: {}]
  %s1 = inlined_call_operand.vmem [shape: f32[2,8], index: 1, kind: input, shape index: {}]
  %s2 = inlined_call_operand.vmem [shape: f32[32,4], index: 2, kind: input, shape index: {}]
  %s3 = inlined_call_operand.vmem [shape: f32[32,2], index: 3, kind: input, shape index: {}]
  %s4 = inlined_call_operand.vmem [shape: f32[32,1], index: 4, kind: input, shape index: {}]
  %s5 = inlined_call_operand.vmem [shape: f32[1,32], index: 5, kind: input, shape index: {}]
  %s6 = inlined_call_operand.<no memory space> [shape: f32[1,1], index: 6, kind: input, shape index: {}]
  %s7 = inlined_call_operand.hbm [shape: f32[1,8], index: 7, kind: output, shape index: {}]
  %s8 = sld [smem:[#allocation0]]
  $region38: #{critic_forward.1} parent=0
    _
  %s10 = ssub.s32 1, %s8
  %s11 = scalar_select 0, %s10, %s8
  %12 = sst [smem:[#allocation2]] %s6
  $region1: #{critic_forward.1} parent=0
    #allocation3 [shape = 'u8[512]{0}', space=vmem, size = 0x400, scoped, tag = 'output window, operand 0, single buffered']
    #allocation4 [shape = 's32[1]{0}', space=sflag, size = 0x4, scoped, tag = 'scoped memory for critic_forward.1']
    %13 = vsyncpa [#allocation4], 0
    // Predicated region
    $region2: #{critic_forward.1} parent=1 // pred_check
      _
    $region3: #{critic_forward.1} parent=1 // pred_check_branch
      %15 = sbr.rel (0) target = $region5
    $region4: #{critic_forward.1} parent=1 // pred_region
      _
    $region5: #{critic_forward.1} parent=1 // pred_fallthru
      _
    // Predicated region
    $region6: #{critic_forward.1} parent=1 // pred_check
      _
    $region7: #{critic_forward.1} parent=1 // pred_check_branch
      %17 = sbr.rel (0) target = $region9
    $region8: #{critic_forward.1} parent=1 // pred_region
      _
    $region9: #{critic_forward.1} parent=1 // pred_fallthru
      _
    // Predicated region
    $region10: #{critic_forward.1} parent=1 // pred_check
      _
    $region11: #{critic_forward.1} parent=1 // pred_check_branch
      %19 = sbr.rel (0) target = $region13
    $region12: #{critic_forward.1} parent=1 // pred_region
      _
    $region13: #{critic_forward.1} parent=1 // pred_fallthru
      _
    // Predicated region
    $region14: #{critic_forward.1} parent=1 // pred_check
      _
    $region15: #{critic_forward.1} parent=1 // pred_check_branch
      %21 = sbr.rel (0) target = $region17
    $region16: #{critic_forward.1} parent=1 // pred_region
      _
    $region17: #{critic_forward.1} parent=1 // pred_fallthru
      _
    // Predicated region
    $region18: #{critic_forward.1} parent=1 // pred_check
      _
    $region19: #{critic_forward.1} parent=1 // pred_check_branch
      %23 = sbr.rel (0) target = $region21
    $region20: #{critic_forward.1} parent=1 // pred_region
      _
    $region21: #{critic_forward.1} parent=1 // pred_fallthru
      _
    // Predicated region
    $region22: #{critic_forward.1} parent=1 // pred_check
      _
    $region23: #{critic_forward.1} parent=1 // pred_check_branch
      %25 = sbr.rel (0) target = $region25
    $region24: #{critic_forward.1} parent=1 // pred_region
      _
    $region25: #{critic_forward.1} parent=1 // pred_fallthru
      _
    // Predicated region
    $region26: #{critic_forward.1} parent=1 // pred_check
      _
    $region27: #{critic_forward.1} parent=1 // pred_check_branch
      %27 = sbr.rel (0) target = $region29
    $region28: #{critic_forward.1} parent=1 // pred_region
      _
    $region29: #{critic_forward.1} parent=1 // pred_fallthru
      _
    %v28 = vld [vmem:[%s2] sm:$0xff]
    %v29 = vld [vmem:[%s2 + $0x8] sm:$0xff]
    %v30 = vld [vmem:[%s2 + $0x10] sm:$0xff]
    %v31 = vld [vmem:[%s2 + $0x18] sm:$0xff]
    %v32 = vld [vmem:[%s0] sm:$0xf]
    %v33 = vld [vmem:[%s3] sm:$0xff]
    %v34 = vld [vmem:[%s3 + $0x8] sm:$0xff]
    %v35 = vld [vmem:[%s3 + $0x10] sm:$0xff]
    %v36 = vld [vmem:[%s3 + $0x18] sm:$0xff]
    %v37 = vld [vmem:[%s1] sm:$0x3]
    %vm38 = vcmask 15360
    %v40 = vsel %vm38, %v33, 0
    %v43 = vsel %vm38, %v34, 0
    %v46 = vsel %vm38, %v35, 0
    %v49 = vsel %vm38, %v36, 0
    %vm51 = vcmask 1041408
    %v53 = vsel %vm51, %v37, 0
    %55 = vmatpush.msra.mxu0 0.0
    %56 = vmatpush.msra.mxu0 0.0
    %57 = vmatpush.msra.mxu0 0.0
    %58 = vmatpush.msra.mxu0 0.0
    %59 = vmatpush.msra.mxu0 0.0
    %60 = vmatpush.msra.mxu0 0.0
    %61 = vmatpush.msra.mxu0 0.0
    %62 = vmatpush.msra.mxu0 0.0
    %63 = vmatpush.msra.mxu0 0.0
    %64 = vmatpush.msra.mxu0 0.0
    %65 = vmatpush.msra.mxu0 0.0
    %66 = vmatpush.msra.mxu0 0.0
    %67 = vmatpush.msra.mxu0 0.0
    %68 = vmatpush.msra.mxu0 0.0
    %69 = vmatpush.msra.mxu0 0.0
    %70 = vmatpush.msra.mxu0 %v53
    %71 = vmatmul.f32.gmra.mxu0 %v40
    %v72 = vpop.f32.mrf.mxu0
    %v73 = vadd.f32 0.0, %v72
    %74 = vmatmul.f32.gmra.mxu0 %v43
    %v75 = vpop.f32.mrf.mxu0
    %v76 = vadd.f32 0.0, %v75
    %77 = vmatmul.f32.gmra.mxu0 %v46
    %v78 = vpop.f32.mrf.mxu0
    %v79 = vadd.f32 0.0, %v78
    %80 = vmatmul.f32.gmra.mxu0 %v49
    %v81 = vpop.f32.mrf.mxu0
    %v82 = vadd.f32 0.0, %v81
    %83 = vdwg.mxu0
    %vm84 = vcmask 31744
    %v86 = vsel %vm84, %v28, 0
    %v89 = vsel %vm84, %v29, 0
    %v92 = vsel %vm84, %v30, 0
    %v95 = vsel %vm84, %v31, 0
    %vm97 = vcmask 1043456
    %v99 = vsel %vm97, %v32, 0
    %101 = vmatpush.msra.mxu0 0.0
    %102 = vmatpush.msra.mxu0 0.0
    %103 = vmatpush.msra.mxu0 0.0
    %104 = vmatpush.msra.mxu0 0.0
    %105 = vmatpush.msra.mxu0 0.0
    %106 = vmatpush.msra.mxu0 0.0
    %107 = vmatpush.msra.mxu0 0.0
    %108 = vmatpush.msra.mxu0 0.0
    %109 = vmatpush.msra.mxu0 0.0
    %110 = vmatpush.msra.mxu0 0.0
    %111 = vmatpush.msra.mxu0 0.0
    %112 = vmatpush.msra.mxu0 0.0
    %113 = vmatpush.msra.mxu0 0.0
    %114 = vmatpush.msra.mxu0 0.0
    %115 = vmatpush.msra.mxu0 0.0
    %116 = vmatpush.msra.mxu0 %v99
    %117 = vmatmul.f32.gmra.mxu0 %v86
    %v118 = vpop.f32.mrf.mxu0
    %v119 = vadd.f32 %v73, %v118
    %120 = vmatmul.f32.gmra.mxu0 %v89
    %v121 = vpop.f32.mrf.mxu0
    %v122 = vadd.f32 %v76, %v121
    %123 = vmatmul.f32.gmra.mxu0 %v92
    %v124 = vpop.f32.mrf.mxu0
    %v125 = vadd.f32 %v79, %v124
    %126 = vmatmul.f32.gmra.mxu0 %v95
    %v127 = vpop.f32.mrf.mxu0
    %v128 = vadd.f32 %v82, %v127
    %129 = vdwg.mxu0
    %v130 = vld [vmem:[%s4] sm:$0xff]
    %v131 = vld [vmem:[%s4 + $0x8] sm:$0xff]
    %v132 = vld [vmem:[%s4 + $0x10] sm:$0xff]
    %v133 = vld [vmem:[%s4 + $0x18] sm:$0xff]
    %135 = vset.pattern.permute.xlu0 0
    %136 = vperm.xlu0 %135, %v130
    %v137 = vpop.permute.xlu0 %136
    %140 = vset.pattern.permute.xlu0 0
    %141 = vperm.xlu0 %140, %v131
    %v142 = vpop.permute.xlu0 %141
    %145 = vset.pattern.permute.xlu0 0
    %146 = vperm.xlu0 %145, %v132
    %v147 = vpop.permute.xlu0 %146
    %150 = vset.pattern.permute.xlu0 0
    %151 = vperm.xlu0 %150, %v133
    %v152 = vpop.permute.xlu0 %151
    %v154 = vadd.f32 %v119, %v137
    %v155 = vadd.f32 %v122, %v142
    %v156 = vadd.f32 %v125, %v147
    %v157 = vadd.f32 %v128, %v152
    %v158 = vmax.f32 %v154, 0.0
    %v159 = vmax.f32 %v155, 0.0
    %v160 = vmax.f32 %v156, 0.0
    %v161 = vmax.f32 %v157, 0.0
    %v162 = vld [vmem:[%s5] sm:$0x1]
    %s163 = sld [smem:[#allocation2]]
    %v164 = vstv %s163
    %vm165 = vcmask 261120
    %v167 = vsel %vm165, %v162, 0
    %169 = vmatpush.msra.mxu0 0.0
    %170 = vmatpush.msra.mxu0 0.0
    %171 = vmatpush.msra.mxu0 0.0
    %172 = vmatpush.msra.mxu0 0.0
    %173 = vmatpush.msra.mxu0 0.0
    %174 = vmatpush.msra.mxu0 0.0
    %175 = vmatpush.msra.mxu0 0.0
    %176 = vmatpush.msra.mxu0 0.0
    %177 = vmatpush.msra.mxu0 0.0
    %178 = vmatpush.msra.mxu0 0.0
    %179 = vmatpush.msra.mxu0 0.0
    %180 = vmatpush.msra.mxu0 0.0
    %181 = vmatpush.msra.mxu0 %v161
    %182 = vmatpush.msra.mxu0 %v160
    %183 = vmatpush.msra.mxu0 %v159
    %184 = vmatpush.msra.mxu0 %v158
    %185 = vmatmul.f32.gmra.mxu0 %v167
    %v186 = vpop.f32.mrf.mxu0
    %v187 = vadd.f32 %v164, %v186
    %188 = vdwg.mxu0
    %vm189 = vcmask 57344
    %190 = vst.msk [vmem:[#allocation3] sm:$0x1] %vm189, %v187
    // Predicated region
    $region30: #{critic_forward.1} parent=1 // pred_check
      _
    $region31: #{critic_forward.1} parent=1 // pred_check_branch
      %192 = sbr.rel (0) target = $region33
    $region32: #{critic_forward.1} parent=1 // pred_region
      %194 = vsyncadd [#allocation4], 0
      %s196 = sshll.u32 [#allocation3], 4
      %s197 = int_to_ptr.vmem [resolvable:$true] %s196
      %s198 = sshll.u32 %s7, 4
      %s199 = int_to_ptr.hbm [resolvable:$true] %s198
      %201 = dma.vmem_to_hbm [thread:$0]  %s197, 16, %s199, [#allocation4]
    $region33: #{critic_forward.1} parent=1 // pred_fallthru
      _
    // Predicated region
    $region34: #{critic_forward.1} parent=1 // pred_check
      _
    $region35: #{critic_forward.1} parent=1 // pred_check_branch
      %203 = sbr.rel (0) target = $region37
    $region36: #{critic_forward.1} parent=1 // pred_region
      %205 = dma.done [#allocation4], 16
    $region37: #{critic_forward.1} parent=1 // pred_fallthru
      _
    %206 = vsyncpa [#allocation4], 1

</llo_original>
